<compile_context>
chip_gen: v7x
topology: tpu7x:2x2x1
jax: 0.10.0
libtpu: 0.0.40
codegen_flags: <defaults>
</compile_context>

<pallas_src>
import functools

import numpy as np
import jax
import jax.numpy as jnp
from jax.experimental import pallas as pl
from jax.experimental.pallas import tpu as pltpu


# ----------------------------------------------------------------------------
# Parameter construction (mirrors cv2.getGaussianKernel for sigma > 0)
# ----------------------------------------------------------------------------
def _gaussian_1d(ksize: int, sigma: float) -> np.ndarray:
    xs = np.arange(ksize, dtype=np.float64) - (ksize - 1) / 2.0
    g = np.exp(-(xs ** 2) / (2.0 * sigma ** 2))
    return g / g.sum()


def _conv_matrix(size: int, ksize: int, pad: int, g1d: np.ndarray) -> np.ndarray:
    """(size, size) matrix M s.t. (signal @ M) applies replication-pad(pad)
    followed by 'valid' 1-D correlation with g1d along that axis."""
    padded = size + 2 * pad
    out = padded - ksize + 1
    A = np.zeros((padded, out), dtype=np.float64)      # valid correlation
    for i in range(out):
        A[i:i + ksize, i] = g1d
    R = np.zeros((padded, size), dtype=np.float64)     # replication padding
    for r in range(padded):
        R[r, min(max(r - pad, 0), size - 1)] = 1.0
    return (R.T @ A).astype(np.float32)                # (size, out==size)


def _round_up(v: int, m: int) -> int:
    return ((v + m - 1) // m) * m


def _default_vmem_limit_bytes() -> int:
    """Per-generation scoped-VMEM request, leaving headroom for Mosaic scratch."""
    cap = None
    try:
        cap = getattr(pltpu.get_tpu_info(), "vmem_capacity_bytes", None)
    except Exception:
        cap = None
    if not cap:
        cap = 64 * 1024 * 1024          # conservative: v7x physical VMEM per TC
    return int(min(cap * 3 // 4, 96 * 1024 * 1024))


def _step_vmem_bytes(cg: int, Hp: int, Wp: int, mm_itemsize: int) -> int:
    """Rough per-grid-step VMEM high-water estimate (bytes)."""
    f32 = 4
    blk = cg * Hp * Wp
    return (2 * blk * f32                               # x block (double-buffered)
            + 2 * blk * f32                             # out block (double-buffered)
            + 2 * Hp * Wp * f32                         # mask block
            + 2 * (Hp * Hp + Wp * Wp) * mm_itemsize     # constant conv matrices (2 bufs)
            + blk * mm_itemsize                         # xm scratch (W-blur operand)
            + blk * (f32 + mm_itemsize)                 # t (f32 acc) + its cast
            + 4 * Hp * Wp * f32)                        # epilogue temporaries


# ----------------------------------------------------------------------------
# Pallas kernel: one (image, channel-group) per grid point
# ----------------------------------------------------------------------------
def _hfc_kernel(med_ref, x_ref, mask_ref, mlt_ref, mr_ref, o_ref, xm_ref, *,
                C, cg, Hp, ratio, sub_low_ratio, is_clamp, sub_mask,
                vmin, vmax, matmul_dtype):
    n = pl.program_id(0)
    g = pl.program_id(1)
    base = n * C + g * cg                      # flat (n, c) index of channel 0

    m = mask_ref[0, 0]                         # (Hp, Wp) f32
    one_minus_m = 1.0 - m

    # --- median padding: write matmul-dtype rows straight into the W-blur
    #     operand (no concatenate, no f32 slab held across the matmuls).
    for c in range(cg):
        med = med_ref[base + c]                # scalar from SMEM
        xm_ref[c * Hp:(c + 1) * Hp, :] = (
            m * x_ref[0, c] + one_minus_m * med).astype(matmul_dtype)

    # --- W-direction blur, row-batched over the channel group (MXU):
    #     (cg*Hp, Wp) @ (Wp, Wp), f32 accumulation.
    t = jnp.dot(xm_ref[...], mr_ref[...], preferred_element_type=jnp.float32)
    t = t.astype(matmul_dtype)                 # cast once, outside the channel loop

    # --- H-direction blur + fused epilogue (per channel; Hp is tile-aligned so
    #     the static row slices are layout-free).
    mlt = mlt_ref[...]
    for c in range(cg):
        gauss = jnp.dot(mlt, t[c * Hp:(c + 1) * Hp, :],
                        preferred_element_type=jnp.float32)
        med = med_ref[base + c]
        # Recompute xm in f32 (2 VPU ops, VPU has slack) so the residual keeps
        # full precision even on the bf16 matmul path.
        xm_c = m * x_ref[0, c] + one_minus_m * med
        res = ratio * (xm_c - sub_low_ratio * gauss)
        if is_clamp:
            res = jnp.clip(res, vmin, vmax)
        if sub_mask:
            res = (res + 1.0) * m - 1.0
        o_ref[0, c] = res.astype(o_ref.dtype)


# ----------------------------------------------------------------------------
# Wrapper
# ----------------------------------------------------------------------------
def hfc_filter(x, mask, *, filter_width=23, nsig=20, ratio=4.0,
               sub_low_ratio=1.0, sub_mask=False, is_clamp=True,
               matmul_dtype=jnp.bfloat16):
    """x: (N, C, H, W) f32; mask: (N, 1, H, W) f32 (broadcast over C).

    NOTE: the reference PyTorch module ignores its `ratio` ctor argument and
    hard-codes self.ratio = 4; here the argument is honoured (default 4), so
    the default call matches PyTorch exactly.
    """
    assert filter_width % 2 == 1, "odd filter width keeps H, W unchanged"
    N, C, H, W = x.shape
    assert mask.shape == (N, 1, H, W)
    pad = filter_width // 2

    # Per-(n, c) torch-style lower median over spatial dims, plus 0.2.
    # TODO(synk): median (k-th order statistic) has no clean in-kernel Pallas
    # TPU primitive; selected wrapper-side (jnp.partition) and fed via SMEM.
    kth = (H * W - 1) // 2
    flat = x.reshape(N, C, H * W)
    med = jnp.partition(flat, kth, axis=-1)[..., kth] + 0.2
    med = med.reshape(N * C).astype(jnp.float32)        # flat 1-D SMEM array

    mm_itemsize = jnp.dtype(matmul_dtype).itemsize
    row_align = 16 if mm_itemsize == 2 else 8            # bf16 packs 16 sublanes
    Hp = _round_up(H, row_align)
    Wp = _round_up(W, 128)
    if (Hp, Wp) != (H, W):
        x_p = jnp.pad(x, ((0, 0), (0, 0), (0, Hp - H), (0, Wp - W)))
        mask_p = jnp.pad(mask, ((0, 0), (0, 0), (0, Hp - H), (0, Wp - W)))
    else:
        x_p, mask_p = x, mask

    # Fold replication padding + separable Gaussian into banded matrices and
    # zero-extend to the padded sizes: zero rows/cols provably block any
    # contribution from the pad region; the output pad region is cropped below.
    g1d = _gaussian_1d(filter_width, float(nsig))
    ml = _conv_matrix(H, filter_width, pad, g1d)          # (H, H)
    mr = _conv_matrix(W, filter_width, pad, g1d)          # (W, W)
    mlt_np = np.zeros((Hp, Hp), np.float32); mlt_np[:H, :H] = ml.T
    mr_np = np.zeros((Wp, Wp), np.float32);  mr_np[:W, :W] = mr
    mlt_p = jnp.asarray(mlt_np, dtype=matmul_dtype)       # (Hp, Hp) = M_left^T
    mr_p = jnp.asarray(mr_np, dtype=matmul_dtype)         # (Wp, Wp) = M_right

    # --- channel-group size: largest divisor of C whose per-step VMEM estimate
    #     fits the budget, then shrunk (if possible) so the grid has >= 2 steps.
    vmem_limit = _default_vmem_limit_bytes()
    budget = int(vmem_limit * 0.6)
    divisors = [d for d in range(1, C + 1) if C % d == 0]
    cg = 1
    for d in divisors:
        if _step_vmem_bytes(d, Hp, Wp, mm_itemsize) <= budget:
            cg = d
    while cg > 1 and N * (C // cg) < 2:
        cg = max(d for d in divisors if d < cg)
    G = C // cg

    kernel = functools.partial(
        _hfc_kernel,
        C=C, cg=cg, Hp=Hp,
        ratio=float(ratio), sub_low_ratio=float(sub_low_ratio),
        is_clamp=bool(is_clamp), sub_mask=bool(sub_mask),
        vmin=-1.0, vmax=1.0, matmul_dtype=matmul_dtype,
    )

    mm_flops = 2 * N * C * (Hp * Wp * Wp + Hp * Hp * Wp)
    ew_flops = 12 * N * C * Hp * Wp
    bytes_accessed = (2 * N * C * Hp * Wp * 4            # x read + out write
                      + N * Hp * Wp * 4                  # mask
                      + (Hp * Hp + Wp * Wp) * mm_itemsize
                      + N * C * 4)                       # medians
    cost = pl.CostEstimate(flops=int(mm_flops + ew_flops),
                           transcendentals=0,
                           bytes_accessed=int(bytes_accessed))

    out_p = pl.pallas_call(
        kernel,
        out_shape=jax.ShapeDtypeStruct((N, C, Hp, Wp), x.dtype),
        grid=(N, G),
        in_specs=[
            pl.BlockSpec(memory_space=pltpu.MemorySpace.SMEM),         # medians (N*C,)
            pl.BlockSpec((1, cg, Hp, Wp), lambda n, g: (n, g, 0, 0)),  # x
            pl.BlockSpec((1, 1, Hp, Wp), lambda n, g: (n, 0, 0, 0)),   # mask (C-const)
            pl.BlockSpec((Hp, Hp), lambda n, g: (0, 0)),               # M_left^T
            pl.BlockSpec((Wp, Wp), lambda n, g: (0, 0)),               # M_right
        ],
        out_specs=pl.BlockSpec((1, cg, Hp, Wp), lambda n, g: (n, g, 0, 0)),
        scratch_shapes=[pltpu.VMEM((cg * Hp, Wp), matmul_dtype)],      # xm rows
        compiler_params=pltpu.CompilerParams(
            dimension_semantics=("parallel", "parallel"),
            vmem_limit_bytes=vmem_limit),
        cost_estimate=cost,
    )(med, x_p, mask_p, mlt_p, mr_p)

    if (Hp, Wp) != (H, W):
        out_p = out_p[:, :, :H, :W]
    return out_p


# ----------------------------------------------------------------------------
# Pure-JAX reference (independent: edge-pad + dense 2-D conv)
# ----------------------------------------------------------------------------
def _ref_hfc(x, mask, filter_width=23, nsig=20):
    N, C, H, W = x.shape
    pad = filter_width // 2
    kth = (H * W - 1) // 2
    flat = x.reshape(N, C, -1)
    med = jnp.partition(flat, kth, axis=-1)[..., kth] + 0.2
    xm = mask * x + (1.0 - mask) * med[:, :, None, None]
    g1 = jnp.asarray(_gaussian_1d(filter_width, float(nsig)), jnp.float32)
    k2 = jnp.outer(g1, g1)[None, None]
    xp = jnp.pad(xm, ((0, 0), (0, 0), (pad, pad), (pad, pad)), mode="edge")
    xpr = xp.reshape(N * C, 1, H + 2 * pad, W + 2 * pad)
    go = jax.lax.conv_general_dilated(xpr, k2, (1, 1), "VALID",
                                      precision=jax.lax.Precision.HIGHEST)
    go = go.reshape(N, C, H, W)
    return jnp.clip(4.0 * (xm - go), -1.0, 1.0)


if __name__ == "__main__":
    key = jax.random.PRNGKey(0)
    kx, km = jax.random.split(key)
    N, C, H, W = 2, 4, 16, 16
    x = jax.random.normal(kx, (N, C, H, W), dtype=jnp.float32)
    mask = (jax.random.uniform(km, (N, 1, H, W)) > 0.3).astype(jnp.float32)

    ref = jax.block_until_ready(_ref_hfc(x, mask))

    # f32 matmul-operand path: tight check against the reference.
    out_f32 = jax.block_until_ready(hfc_filter(x, mask, matmul_dtype=jnp.float32))
    assert out_f32.shape == (N, C, H, W)
    np.testing.assert_allclose(np.asarray(out_f32), np.asarray(ref),
                               atol=1e-2, rtol=0)

    # Default fast path (bf16 MXU operands, f32 accumulation, f32 residual).
    out = jax.block_until_ready(hfc_filter(x, mask))
    assert out.shape == (N, C, H, W)
    np.testing.assert_allclose(np.asarray(out), np.asarray(ref),
                               atol=5e-2, rtol=0)

    print("KERNEL_OK")
</pallas_src>

<mosaic_0001>
module attributes {stable_mosaic.version = 11 : i64} {
  func.func @_hfc_kernel(%arg0: i32, %arg1: i32, %arg2: memref<8xf32, #tpu.memory_space<smem>>, %arg3: memref<1x4x16x128xf32, #tpu.memory_space<vmem>>, %arg4: memref<1x1x16x128xf32, #tpu.memory_space<vmem>>, %arg5: memref<16x16xf32, #tpu.memory_space<vmem>>, %arg6: memref<128x128xf32, #tpu.memory_space<vmem>>, %arg7: memref<1x4x16x128xf32, #tpu.memory_space<vmem>>, %arg8: memref<64x128xf32, #tpu.memory_space<vmem>>) attributes {dimension_semantics = [#tpu.dimension_semantics<parallel>, #tpu.dimension_semantics<parallel>], iteration_bounds = array<i64: 2, 1>, scalar_prefetch = 0 : i64, scratch_operands = 1 : i64, tpu.core_type = #tpu.core_type<tc>, window_params = [{transform_indices = @transform_0, window_bounds = array<i64: 8>}, {transform_indices = @transform_1, window_bounds = array<i64: 1, 4, 16, 128>}, {transform_indices = @transform_2, window_bounds = array<i64: 1, 1, 16, 128>}, {pipeline_mode = #tpu.pipeline_mode<synchronous>, transform_indices = @transform_3, window_bounds = array<i64: 16, 16>}, {pipeline_mode = #tpu.pipeline_mode<synchronous>, transform_indices = @transform_4, window_bounds = array<i64: 128, 128>}, {transform_indices = @transform_5, window_bounds = array<i64: 1, 4, 16, 128>}]} {
    %c4_i32 = arith.constant 4 : i32
    %0 = arith.muli %arg0, %c4_i32 : i32
    %c4_i32_0 = arith.constant 4 : i32
    %1 = arith.muli %arg1, %c4_i32_0 : i32
    %2 = arith.addi %0, %1 : i32
    %c0 = arith.constant 0 : index
    %c0_1 = arith.constant 0 : index
    %c0_2 = arith.constant 0 : index
    %c0_3 = arith.constant 0 : index
    %3 = vector.load %arg4[%c0, %c0_1, %c0_2, %c0_3] : memref<1x1x16x128xf32, #tpu.memory_space<vmem>>, vector<1x1x16x128xf32>
    %4 = vector.shape_cast %3 : vector<1x1x16x128xf32> to vector<16x128xf32>
    %cst = arith.constant 1.000000e+00 : f32
    %5 = vector.broadcast %cst : f32 to vector<16x128xf32>
    %6 = arith.subf %5, %4 : vector<16x128xf32>
    %c0_i32 = arith.constant 0 : i32
    %7 = arith.addi %2, %c0_i32 : i32
    %8 = arith.index_cast %7 : i32 to index
    %9 = memref.load %arg2[%8] : memref<8xf32, #tpu.memory_space<smem>>
    %c0_4 = arith.constant 0 : index
    %c0_5 = arith.constant 0 : index
    %c0_6 = arith.constant 0 : index
    %c0_7 = arith.constant 0 : index
    %10 = vector.load %arg3[%c0_4, %c0_5, %c0_6, %c0_7] : memref<1x4x16x128xf32, #tpu.memory_space<vmem>>, vector<1x1x16x128xf32>
    %11 = vector.shape_cast %10 : vector<1x1x16x128xf32> to vector<16x128xf32>
    %12 = arith.mulf %4, %11 : vector<16x128xf32>
    %13 = vector.broadcast %9 : f32 to vector<16x128xf32>
    %14 = arith.mulf %6, %13 : vector<16x128xf32>
    %15 = arith.addf %12, %14 : vector<16x128xf32>
    %c0_8 = arith.constant 0 : index
    %c0_9 = arith.constant 0 : index
    %16 = vector.load %arg8[%c0_8, %c0_9] : memref<64x128xf32, #tpu.memory_space<vmem>>, vector<16x128xf32>
    tpu.vector_store %arg8[%c0_8, %c0_9], %15 {strides = array<i32>} : memref<64x128xf32, #tpu.memory_space<vmem>>, vector<16x128xf32>,
    %c1_i32 = arith.constant 1 : i32
    %17 = arith.addi %2, %c1_i32 : i32
    %18 = arith.index_cast %17 : i32 to index
    %19 = memref.load %arg2[%18] : memref<8xf32, #tpu.memory_space<smem>>
    %c0_10 = arith.constant 0 : index
    %c1 = arith.constant 1 : index
    %c0_11 = arith.constant 0 : index
    %c0_12 = arith.constant 0 : index
    %20 = vector.load %arg3[%c0_10, %c1, %c0_11, %c0_12] : memref<1x4x16x128xf32, #tpu.memory_space<vmem>>, vector<1x1x16x128xf32>
    %21 = vector.shape_cast %20 : vector<1x1x16x128xf32> to vector<16x128xf32>
    %22 = arith.mulf %4, %21 : vector<16x128xf32>
    %23 = vector.broadcast %19 : f32 to vector<16x128xf32>
    %24 = arith.mulf %6, %23 : vector<16x128xf32>
    %25 = arith.addf %22, %24 : vector<16x128xf32>
    %c16 = arith.constant 16 : index
    %c0_13 = arith.constant 0 : index
    %26 = vector.load %arg8[%c16, %c0_13] : memref<64x128xf32, #tpu.memory_space<vmem>>, vector<16x128xf32>
    tpu.vector_store %arg8[%c16, %c0_13], %25 {strides = array<i32>} : memref<64x128xf32, #tpu.memory_space<vmem>>, vector<16x128xf32>,
    %c2_i32 = arith.constant 2 : i32
    %27 = arith.addi %2, %c2_i32 : i32
    %28 = arith.index_cast %27 : i32 to index
    %29 = memref.load %arg2[%28] : memref<8xf32, #tpu.memory_space<smem>>
    %c0_14 = arith.constant 0 : index
    %c2 = arith.constant 2 : index
    %c0_15 = arith.constant 0 : index
    %c0_16 = arith.constant 0 : index
    %30 = vector.load %arg3[%c0_14, %c2, %c0_15, %c0_16] : memref<1x4x16x128xf32, #tpu.memory_space<vmem>>, vector<1x1x16x128xf32>
    %31 = vector.shape_cast %30 : vector<1x1x16x128xf32> to vector<16x128xf32>
    %32 = arith.mulf %4, %31 : vector<16x128xf32>
    %33 = vector.broadcast %29 : f32 to vector<16x128xf32>
    %34 = arith.mulf %6, %33 : vector<16x128xf32>
    %35 = arith.addf %32, %34 : vector<16x128xf32>
    %c32 = arith.constant 32 : index
    %c0_17 = arith.constant 0 : index
    %36 = vector.load %arg8[%c32, %c0_17] : memref<64x128xf32, #tpu.memory_space<vmem>>, vector<16x128xf32>
    tpu.vector_store %arg8[%c32, %c0_17], %35 {strides = array<i32>} : memref<64x128xf32, #tpu.memory_space<vmem>>, vector<16x128xf32>,
    %c3_i32 = arith.constant 3 : i32
    %37 = arith.addi %2, %c3_i32 : i32
    %38 = arith.index_cast %37 : i32 to index
    %39 = memref.load %arg2[%38] : memref<8xf32, #tpu.memory_space<smem>>
    %c0_18 = arith.constant 0 : index
    %c3 = arith.constant 3 : index
    %c0_19 = arith.constant 0 : index
    %c0_20 = arith.constant 0 : index
    %40 = vector.load %arg3[%c0_18, %c3, %c0_19, %c0_20] : memref<1x4x16x128xf32, #tpu.memory_space<vmem>>, vector<1x1x16x128xf32>
    %41 = vector.shape_cast %40 : vector<1x1x16x128xf32> to vector<16x128xf32>
    %42 = arith.mulf %4, %41 : vector<16x128xf32>
    %43 = vector.broadcast %39 : f32 to vector<16x128xf32>
    %44 = arith.mulf %6, %43 : vector<16x128xf32>
    %45 = arith.addf %42, %44 : vector<16x128xf32>
    %c48 = arith.constant 48 : index
    %c0_21 = arith.constant 0 : index
    %46 = vector.load %arg8[%c48, %c0_21] : memref<64x128xf32, #tpu.memory_space<vmem>>, vector<16x128xf32>
    tpu.vector_store %arg8[%c48, %c0_21], %45 {strides = array<i32>} : memref<64x128xf32, #tpu.memory_space<vmem>>, vector<16x128xf32>,
    %c0_22 = arith.constant 0 : index
    %c0_23 = arith.constant 0 : index
    %47 = vector.load %arg8[%c0_22, %c0_23] : memref<64x128xf32, #tpu.memory_space<vmem>>, vector<64x128xf32>
    %c0_24 = arith.constant 0 : index
    %c0_25 = arith.constant 0 : index
    %48 = vector.load %arg6[%c0_24, %c0_25] : memref<128x128xf32, #tpu.memory_space<vmem>>, vector<128x128xf32>
    %cst_26 = arith.constant dense<0.000000e+00> : vector<64x128xf32>
    %49 = tpu.matmul %47, %48, %cst_26 {dimension_numbers = #tpu.dot_dimension_numbers<[1], [0], [0], [1], [0, 0, 1, 1], [], []>} : vector<64x128xf32>, vector<128x128xf32>, vector<64x128xf32> -> vector<64x128xf32>
    %c0_27 = arith.constant 0 : index
    %c0_28 = arith.constant 0 : index
    %50 = vector.load %arg5[%c0_27, %c0_28] : memref<16x16xf32, #tpu.memory_space<vmem>>, vector<16x16xf32>
    %51 = vector.extract_strided_slice %49 {offsets = [0, 0], sizes = [16, 128], strides = [1, 1]} : vector<64x128xf32> to vector<16x128xf32>
    %cst_29 = arith.constant dense<0.000000e+00> : vector<16x128xf32>
    %52 = tpu.matmul %50, %51, %cst_29 {dimension_numbers = #tpu.dot_dimension_numbers<[1], [0], [0], [1], [0, 0, 1, 1], [], []>} : vector<16x16xf32>, vector<16x128xf32>, vector<16x128xf32> -> vector<16x128xf32>
    %c0_i32_30 = arith.constant 0 : i32
    %53 = arith.addi %2, %c0_i32_30 : i32
    %54 = arith.index_cast %53 : i32 to index
    %55 = memref.load %arg2[%54] : memref<8xf32, #tpu.memory_space<smem>>
    %c0_31 = arith.constant 0 : index
    %c0_32 = arith.constant 0 : index
    %c0_33 = arith.constant 0 : index
    %c0_34 = arith.constant 0 : index
    %56 = vector.load %arg3[%c0_31, %c0_32, %c0_33, %c0_34] : memref<1x4x16x128xf32, #tpu.memory_space<vmem>>, vector<1x1x16x128xf32>
    %57 = vector.shape_cast %56 : vector<1x1x16x128xf32> to vector<16x128xf32>
    %58 = arith.mulf %4, %57 : vector<16x128xf32>
    %59 = vector.broadcast %55 : f32 to vector<16x128xf32>
    %60 = arith.mulf %6, %59 : vector<16x128xf32>
    %61 = arith.addf %58, %60 : vector<16x128xf32>
    %cst_35 = arith.constant 1.000000e+00 : f32
    %62 = vector.broadcast %cst_35 : f32 to vector<16x128xf32>
    %63 = arith.mulf %62, %52 : vector<16x128xf32>
    %64 = arith.subf %61, %63 : vector<16x128xf32>
    %cst_36 = arith.constant 4.000000e+00 : f32
    %65 = vector.broadcast %cst_36 : f32 to vector<16x128xf32>
    %66 = arith.mulf %65, %64 : vector<16x128xf32>
    %cst_37 = arith.constant -1.000000e+00 : f32
    %cst_38 = arith.constant 1.000000e+00 : f32
    %67 = vector.broadcast %cst_37 : f32 to vector<16x128xf32>
    %68 = arith.maximumf %67, %66 : vector<16x128xf32>
    %69 = vector.broadcast %cst_38 : f32 to vector<16x128xf32>
    %70 = arith.minimumf %69, %68 : vector<16x128xf32>
    %c0_39 = arith.constant 0 : index
    %c0_40 = arith.constant 0 : index
    %c0_41 = arith.constant 0 : index
    %c0_42 = arith.constant 0 : index
    %71 = vector.load %arg7[%c0_39, %c0_40, %c0_41, %c0_42] : memref<1x4x16x128xf32, #tpu.memory_space<vmem>>, vector<1x1x16x128xf32>
    %72 = vector.shape_cast %71 : vector<1x1x16x128xf32> to vector<16x128xf32>
    %73 = vector.shape_cast %70 : vector<16x128xf32> to vector<1x1x16x128xf32>
    tpu.vector_store %arg7[%c0_39, %c0_40, %c0_41, %c0_42], %73 {strides = array<i32>} : memref<1x4x16x128xf32, #tpu.memory_space<vmem>>, vector<1x1x16x128xf32>,
    %74 = vector.extract_strided_slice %49 {offsets = [16, 0], sizes = [16, 128], strides = [1, 1]} : vector<64x128xf32> to vector<16x128xf32>
    %cst_43 = arith.constant dense<0.000000e+00> : vector<16x128xf32>
    %75 = tpu.matmul %50, %74, %cst_43 {dimension_numbers = #tpu.dot_dimension_numbers<[1], [0], [0], [1], [0, 0, 1, 1], [], []>} : vector<16x16xf32>, vector<16x128xf32>, vector<16x128xf32> -> vector<16x128xf32>
    %c1_i32_44 = arith.constant 1 : i32
    %76 = arith.addi %2, %c1_i32_44 : i32
    %77 = arith.index_cast %76 : i32 to index
    %78 = memref.load %arg2[%77] : memref<8xf32, #tpu.memory_space<smem>>
    %c0_45 = arith.constant 0 : index
    %c1_46 = arith.constant 1 : index
    %c0_47 = arith.constant 0 : index
    %c0_48 = arith.constant 0 : index
    %79 = vector.load %arg3[%c0_45, %c1_46, %c0_47, %c0_48] : memref<1x4x16x128xf32, #tpu.memory_space<vmem>>, vector<1x1x16x128xf32>
    %80 = vector.shape_cast %79 : vector<1x1x16x128xf32> to vector<16x128xf32>
    %81 = arith.mulf %4, %80 : vector<16x128xf32>
    %82 = vector.broadcast %78 : f32 to vector<16x128xf32>
    %83 = arith.mulf %6, %82 : vector<16x128xf32>
    %84 = arith.addf %81, %83 : vector<16x128xf32>
    %cst_49 = arith.constant 1.000000e+00 : f32
    %85 = vector.broadcast %cst_49 : f32 to vector<16x128xf32>
    %86 = arith.mulf %85, %75 : vector<16x128xf32>
    %87 = arith.subf %84, %86 : vector<16x128xf32>
    %cst_50 = arith.constant 4.000000e+00 : f32
    %88 = vector.broadcast %cst_50 : f32 to vector<16x128xf32>
    %89 = arith.mulf %88, %87 : vector<16x128xf32>
    %cst_51 = arith.constant -1.000000e+00 : f32
    %cst_52 = arith.constant 1.000000e+00 : f32
    %90 = vector.broadcast %cst_51 : f32 to vector<16x128xf32>
    %91 = arith.maximumf %90, %89 : vector<16x128xf32>
    %92 = vector.broadcast %cst_52 : f32 to vector<16x128xf32>
    %93 = arith.minimumf %92, %91 : vector<16x128xf32>
    %c0_53 = arith.constant 0 : index
    %c1_54 = arith.constant 1 : index
    %c0_55 = arith.constant 0 : index
    %c0_56 = arith.constant 0 : index
    %94 = vector.load %arg7[%c0_53, %c1_54, %c0_55, %c0_56] : memref<1x4x16x128xf32, #tpu.memory_space<vmem>>, vector<1x1x16x128xf32>
    %95 = vector.shape_cast %94 : vector<1x1x16x128xf32> to vector<16x128xf32>
    %96 = vector.shape_cast %93 : vector<16x128xf32> to vector<1x1x16x128xf32>
    tpu.vector_store %arg7[%c0_53, %c1_54, %c0_55, %c0_56], %96 {strides = array<i32>} : memref<1x4x16x128xf32, #tpu.memory_space<vmem>>, vector<1x1x16x128xf32>,
    %97 = vector.extract_strided_slice %49 {offsets = [32, 0], sizes = [16, 128], strides = [1, 1]} : vector<64x128xf32> to vector<16x128xf32>
    %cst_57 = arith.constant dense<0.000000e+00> : vector<16x128xf32>
    %98 = tpu.matmul %50, %97, %cst_57 {dimension_numbers = #tpu.dot_dimension_numbers<[1], [0], [0], [1], [0, 0, 1, 1], [], []>} : vector<16x16xf32>, vector<16x128xf32>, vector<16x128xf32> -> vector<16x128xf32>
    %c2_i32_58 = arith.constant 2 : i32
    %99 = arith.addi %2, %c2_i32_58 : i32
    %100 = arith.index_cast %99 : i32 to index
    %101 = memref.load %arg2[%100] : memref<8xf32, #tpu.memory_space<smem>>
    %c0_59 = arith.constant 0 : index
    %c2_60 = arith.constant 2 : index
    %c0_61 = arith.constant 0 : index
    %c0_62 = arith.constant 0 : index
    %102 = vector.load %arg3[%c0_59, %c2_60, %c0_61, %c0_62] : memref<1x4x16x128xf32, #tpu.memory_space<vmem>>, vector<1x1x16x128xf32>
    %103 = vector.shape_cast %102 : vector<1x1x16x128xf32> to vector<16x128xf32>
    %104 = arith.mulf %4, %103 : vector<16x128xf32>
    %105 = vector.broadcast %101 : f32 to vector<16x128xf32>
    %106 = arith.mulf %6, %105 : vector<16x128xf32>
    %107 = arith.addf %104, %106 : vector<16x128xf32>
    %cst_63 = arith.constant 1.000000e+00 : f32
    %108 = vector.broadcast %cst_63 : f32 to vector<16x128xf32>
    %109 = arith.mulf %108, %98 : vector<16x128xf32>
    %110 = arith.subf %107, %109 : vector<16x128xf32>
    %cst_64 = arith.constant 4.000000e+00 : f32
    %111 = vector.broadcast %cst_64 : f32 to vector<16x128xf32>
    %112 = arith.mulf %111, %110 : vector<16x128xf32>
    %cst_65 = arith.constant -1.000000e+00 : f32
    %cst_66 = arith.constant 1.000000e+00 : f32
    %113 = vector.broadcast %cst_65 : f32 to vector<16x128xf32>
    %114 = arith.maximumf %113, %112 : vector<16x128xf32>
    %115 = vector.broadcast %cst_66 : f32 to vector<16x128xf32>
    %116 = arith.minimumf %115, %114 : vector<16x128xf32>
    %c0_67 = arith.constant 0 : index
    %c2_68 = arith.constant 2 : index
    %c0_69 = arith.constant 0 : index
    %c0_70 = arith.constant 0 : index
    %117 = vector.load %arg7[%c0_67, %c2_68, %c0_69, %c0_70] : memref<1x4x16x128xf32, #tpu.memory_space<vmem>>, vector<1x1x16x128xf32>
    %118 = vector.shape_cast %117 : vector<1x1x16x128xf32> to vector<16x128xf32>
    %119 = vector.shape_cast %116 : vector<16x128xf32> to vector<1x1x16x128xf32>
    tpu.vector_store %arg7[%c0_67, %c2_68, %c0_69, %c0_70], %119 {strides = array<i32>} : memref<1x4x16x128xf32, #tpu.memory_space<vmem>>, vector<1x1x16x128xf32>,
    %120 = vector.extract_strided_slice %49 {offsets = [48, 0], sizes = [16, 128], strides = [1, 1]} : vector<64x128xf32> to vector<16x128xf32>
    %cst_71 = arith.constant dense<0.000000e+00> : vector<16x128xf32>
    %121 = tpu.matmul %50, %120, %cst_71 {dimension_numbers = #tpu.dot_dimension_numbers<[1], [0], [0], [1], [0, 0, 1, 1], [], []>} : vector<16x16xf32>, vector<16x128xf32>, vector<16x128xf32> -> vector<16x128xf32>
    %c3_i32_72 = arith.constant 3 : i32
    %122 = arith.addi %2, %c3_i32_72 : i32
    %123 = arith.index_cast %122 : i32 to index
    %124 = memref.load %arg2[%123] : memref<8xf32, #tpu.memory_space<smem>>
    %c0_73 = arith.constant 0 : index
    %c3_74 = arith.constant 3 : index
    %c0_75 = arith.constant 0 : index
    %c0_76 = arith.constant 0 : index
    %125 = vector.load %arg3[%c0_73, %c3_74, %c0_75, %c0_76] : memref<1x4x16x128xf32, #tpu.memory_space<vmem>>, vector<1x1x16x128xf32>
    %126 = vector.shape_cast %125 : vector<1x1x16x128xf32> to vector<16x128xf32>
    %127 = arith.mulf %4, %126 : vector<16x128xf32>
    %128 = vector.broadcast %124 : f32 to vector<16x128xf32>
    %129 = arith.mulf %6, %128 : vector<16x128xf32>
    %130 = arith.addf %127, %129 : vector<16x128xf32>
    %cst_77 = arith.constant 1.000000e+00 : f32
    %131 = vector.broadcast %cst_77 : f32 to vector<16x128xf32>
    %132 = arith.mulf %131, %121 : vector<16x128xf32>
    %133 = arith.subf %130, %132 : vector<16x128xf32>
    %cst_78 = arith.constant 4.000000e+00 : f32
    %134 = vector.broadcast %cst_78 : f32 to vector<16x128xf32>
    %135 = arith.mulf %134, %133 : vector<16x128xf32>
    %cst_79 = arith.constant -1.000000e+00 : f32
    %cst_80 = arith.constant 1.000000e+00 : f32
    %136 = vector.broadcast %cst_79 : f32 to vector<16x128xf32>
    %137 = arith.maximumf %136, %135 : vector<16x128xf32>
    %138 = vector.broadcast %cst_80 : f32 to vector<16x128xf32>
    %139 = arith.minimumf %138, %137 : vector<16x128xf32>
    %c0_81 = arith.constant 0 : index
    %c3_82 = arith.constant 3 : index
    %c0_83 = arith.constant 0 : index
    %c0_84 = arith.constant 0 : index
    %140 = vector.load %arg7[%c0_81, %c3_82, %c0_83, %c0_84] : memref<1x4x16x128xf32, #tpu.memory_space<vmem>>, vector<1x1x16x128xf32>
    %141 = vector.shape_cast %140 : vector<1x1x16x128xf32> to vector<16x128xf32>
    %142 = vector.shape_cast %139 : vector<16x128xf32> to vector<1x1x16x128xf32>
    tpu.vector_store %arg7[%c0_81, %c3_82, %c0_83, %c0_84], %142 {strides = array<i32>} : memref<1x4x16x128xf32, #tpu.memory_space<vmem>>, vector<1x1x16x128xf32>,
    return
  }
  func.func @transform_0(%arg0: i32, %arg1: i32) -> i32 {
    %c0_i32 = arith.constant 0 : i32
    %c0_i32_0 = arith.constant 0 : i32
    return %c0_i32 : i32
  }
  func.func @transform_1(%arg0: i32, %arg1: i32) -> (i32, i32, i32, i32) {
    %c0_i32 = arith.constant 0 : i32
    %c0_i32_0 = arith.constant 0 : i32
    %c0_i32_1 = arith.constant 0 : i32
    return %arg0, %arg1, %c0_i32, %c0_i32_0 : i32, i32, i32, i32
  }
  func.func @transform_2(%arg0: i32, %arg1: i32) -> (i32, i32, i32, i32) {
    %c0_i32 = arith.constant 0 : i32
    %c0_i32_0 = arith.constant 0 : i32
    %c0_i32_1 = arith.constant 0 : i32
    %c0_i32_2 = arith.constant 0 : i32
    return %arg0, %c0_i32, %c0_i32_0, %c0_i32_1 : i32, i32, i32, i32
  }
  func.func @transform_3(%arg0: i32, %arg1: i32) -> (i32, i32) {
    %c0_i32 = arith.constant 0 : i32
    %c0_i32_0 = arith.constant 0 : i32
    %c0_i32_1 = arith.constant 0 : i32
    return %c0_i32, %c0_i32_0 : i32, i32
  }
  func.func @transform_4(%arg0: i32, %arg1: i32) -> (i32, i32) {
    %c0_i32 = arith.constant 0 : i32
    %c0_i32_0 = arith.constant 0 : i32
    %c0_i32_1 = arith.constant 0 : i32
    return %c0_i32, %c0_i32_0 : i32, i32
  }
  func.func @transform_5(%arg0: i32, %arg1: i32) -> (i32, i32, i32, i32) {
    %c0_i32 = arith.constant 0 : i32
    %c0_i32_0 = arith.constant 0 : i32
    %c0_i32_1 = arith.constant 0 : i32
    return %arg0, %arg1, %c0_i32, %c0_i32_0 : i32, i32, i32, i32
  }
}

</mosaic_0001>

<llo_original>
// kernel: tpu_custom_call.1
$region0: #{tpu_custom_call.1}
  #allocation0 [shape = 'u32[]', space=smem, size = 0x4, offset = 0x4, fixed_abs, tag = 'smem constant byte address 0x4 - core index']
  #allocation1 [shape = 'u32[144,128]{1,0:T(1,128)}', space=vmem, size = 0x12000, scoped, tag = 'internal scratch']
  #allocation2 [shape = 'f32[64,128]{1,0:T(8,128)}', space=vmem, size = 0x8000, scoped, tag = 'scratch operand']
  %s0 = inlined_call_operand.hbm [shape: f32[8], index: 0, kind: input, shape index: {}]
  %s1 = inlined_call_operand.hbm [shape: f32[2,4,16,128], index: 1, kind: input, shape index: {}]
  %s2 = inlined_call_operand.hbm [shape: f32[2,1,16,128], index: 2, kind: input, shape index: {}]
  %s3 = inlined_call_operand.hbm [shape: f32[16,16], index: 3, kind: input, shape index: {}]
  %s4 = inlined_call_operand.hbm [shape: f32[128,128], index: 4, kind: input, shape index: {}]
  %s5 = inlined_call_operand.hbm [shape: f32[2,4,16,128], index: 5, kind: output, shape index: {}]
  %s6 = sld [smem:[#allocation0]]
  $region73: #{tpu_custom_call.1} parent=0
    _
  %s8 = ssub.s32 1, %s6
  %s9 = scalar_select 0, %s8, %s6
  $region1: #{tpu_custom_call.1} parent=0
    #allocation3 [shape = 'u8[512]{0}', space=smem, size = 0x200, scoped, tag = 'input window, operand 0, single buffered']
    #allocation4 [shape = 's32[2]{0}', space=sflag, size = 0x8, scoped, tag = 'scoped memory for tpu_custom_call.1']
    #allocation5 [shape = 's32[2]{0}', space=sflag, size = 0x8, scoped, tag = 'scoped memory for tpu_custom_call.1']
    #allocation6 [shape = 's32[2]{0}', space=sflag, size = 0x8, scoped, tag = 'scoped memory for tpu_custom_call.1']
    #allocation7 [shape = 'u8[65536]{0}', space=vmem, size = 0x10000, scoped, tag = 'input window, operand 1']
    #allocation8 [shape = 'u8[16384]{0}', space=vmem, size = 0x4000, scoped, tag = 'input window, operand 2']
    #allocation9 [shape = 's32[2]{0}', space=sflag, size = 0x8, scoped, tag = 'scoped memory for tpu_custom_call.1']
    #allocation10 [shape = 'u8[8192]{0}', space=vmem, size = 0x2000, scoped, tag = 'input window, operand 3, single buffered']
    #allocation11 [shape = 'u8[65536]{0}', space=vmem, size = 0x10000, scoped, tag = 'input window, operand 4, single buffered']
    #allocation12 [shape = 's32[1]{0}', space=sflag, size = 0x4, scoped, tag = 'scoped memory for tpu_custom_call.1']
    #allocation13 [shape = 'u8[65536]{0}', space=vmem, size = 0x10000, scoped, tag = 'output window, operand 0']
    %10 = vsyncpa [#allocation6], 0
    %11 = vsyncpa [#allocation4], 0
    %s12 = scalar_lea.sflag [#allocation4], 1
    %13 = vsyncpa %s12, 0
    %14 = vsyncpa [#allocation9], 0
    %s15 = scalar_lea.sflag [#allocation9], 1
    %16 = vsyncpa %s15, 0
    %17 = vsyncpa [#allocation12], 0
    %18 = vsyncpa [#allocation5], 0
    %s19 = scalar_lea.sflag [#allocation5], 1
    %20 = vsyncpa %s19, 0
    loop: start=0, step=1, limit=4
    $region2: #{tpu_custom_call.1} parent=1 // loop_pre_header
      _
    $region3: #{tpu_custom_call.1} parent=1 // loop_header
      %s22 = sphi 0, %s26
      %p23 = scmp.ge.s32.totalorder %s22, 4
      %s29 = sphi 0, %s41
      %s30 = sphi 0, %s37
      %s31 = sphi 0, %s29
      %s32 = sphi 0, %s30
      %s33 = sphi 0, %s31
      %s34 = sphi 0, %s32
      %s42 = sphi 0, %s42
      %s44 = sphi 0, %s42
      %s45 = sphi 0, %s44
      %s59 = sphi 0, %s45
      %s67 = sphi 0, %s69
      %s70 = sphi 0, %s67
      %s71 = sphi 0, %s70
      %s87 = sphi 0, %s71
      %s93 = sphi 0, %s95
      %s96 = sphi 0, %s93
      %s97 = sphi 0, %s96
      %s113 = sphi 0, %s97
      %s117 = sphi 0, %s117
      %s119 = sphi 0, %s117
      %s120 = sphi 0, %s119
      %s134 = sphi 0, %s120
      %s138 = sphi 0, %s138
      %s140 = sphi 0, %s138
      %s141 = sphi 0, %s140
      %s155 = sphi 0, %s141
      %s163 = sphi 0, %s165
      %s166 = sphi 0, %s163
      %s167 = sphi 0, %s166
      %s183 = sphi 0, %s167
    $region4: #{tpu_custom_call.1} parent=1 // loop_header_branch
      %25 = sbr.rel (%p23) target = $region8
    $region5: #{tpu_custom_call.1} parent=1 // loop_body
      %s27 = ssub.s32 %s22, 1
      %s28 = ssub.s32 %s22, 2
      %s35 = sadd.s32 1, %s30
      %p36 = scmp.ge.s32.totalorder %s35, 1
      %s37 = scalar_select %p36, 0, %s35
      %s38 = sadd.s32 1, %s29
      %s39 = scalar_select %p36, %s38, %s29
      %p40 = scmp.ge.s32.totalorder %s39, 2
      %s41 = scalar_select %p40, 0, %s39
      %s43 = sadd.s32 %s42, 1
      %p46 = scmp.eq.s32.totalorder %s22, 1
      %p47 = scmp.ne.s32.totalorder %s42, %s44
      %p48 = scmp.eq.s32.totalorder %s22, 0
      %p49 = por %p47, %p48
      %p50 = scmp.ne.s32.totalorder %s42, %s44
      %p51 = scmp.eq.s32.totalorder %s27, 1
      %p52 = por %p50, %p51
      %p53 = scmp.ne.s32.totalorder %s44, %s45
      %p54 = scmp.eq.s32.totalorder %s27, 0
      %p55 = por %p53, %p54
      %p56 = scmp.ne.s32.totalorder %s44, %s45
      %p57 = scmp.eq.s32.totalorder %s28, 1
      %p58 = por %p56, %p57
      %p60 = scmp.ne.s32.totalorder %s45, %s59
      %p61 = scmp.eq.s32.totalorder %s28, 0
      %p62 = por %p60, %p61
      %s63 = ssub.s32 %s29, %s41
      %s64 = ssub.s32 %s30, %s37
      %s65 = sor.u32 %s63, %s64
      %p66 = scmp.eq.s32.totalorder %s65, 0
      %s68 = sadd.s32 %s67, 1
      %s69 = scalar_select %p66, %s67, %s68
      %p72 = pneg %p66
      %p73 = scmp.eq.s32.totalorder %s22, 1
      %p74 = por %p72, %p73
      %p75 = scmp.ne.s32.totalorder %s67, %s70
      %p76 = scmp.eq.s32.totalorder %s22, 0
      %p77 = por %p75, %p76
      %p78 = scmp.ne.s32.totalorder %s67, %s70
      %p79 = scmp.eq.s32.totalorder %s27, 1
      %p80 = por %p78, %p79
      %p81 = scmp.ne.s32.totalorder %s70, %s71
      %p82 = scmp.eq.s32.totalorder %s27, 0
      %p83 = por %p81, %p82
      %p84 = scmp.ne.s32.totalorder %s70, %s71
      %p85 = scmp.eq.s32.totalorder %s28, 1
      %p86 = por %p84, %p85
      %p88 = scmp.ne.s32.totalorder %s71, %s87
      %p89 = scmp.eq.s32.totalorder %s28, 0
      %p90 = por %p88, %p89
      %s91 = ssub.s32 %s29, %s41
      %p92 = scmp.eq.s32.totalorder %s91, 0
      %s94 = sadd.s32 %s93, 1
      %s95 = scalar_select %p92, %s93, %s94
      %p98 = pneg %p92
      %p99 = scmp.eq.s32.totalorder %s22, 1
      %p100 = por %p98, %p99
      %p101 = scmp.ne.s32.totalorder %s93, %s96
      %p102 = scmp.eq.s32.totalorder %s22, 0
      %p103 = por %p101, %p102
      %p104 = scmp.ne.s32.totalorder %s93, %s96
      %p105 = scmp.eq.s32.totalorder %s27, 1
      %p106 = por %p104, %p105
      %p107 = scmp.ne.s32.totalorder %s96, %s97
      %p108 = scmp.eq.s32.totalorder %s27, 0
      %p109 = por %p107, %p108
      %p110 = scmp.ne.s32.totalorder %s96, %s97
      %p111 = scmp.eq.s32.totalorder %s28, 1
      %p112 = por %p110, %p111
      %p114 = scmp.ne.s32.totalorder %s97, %s113
      %p115 = scmp.eq.s32.totalorder %s28, 0
      %p116 = por %p114, %p115
      %s118 = sadd.s32 %s117, 1
      %p121 = scmp.eq.s32.totalorder %s22, 1
      %p122 = scmp.ne.s32.totalorder %s117, %s119
      %p123 = scmp.eq.s32.totalorder %s22, 0
      %p124 = por %p122, %p123
      %p125 = scmp.ne.s32.totalorder %s117, %s119
      %p126 = scmp.eq.s32.totalorder %s27, 1
      %p127 = por %p125, %p126
      %p128 = scmp.ne.s32.totalorder %s119, %s120
      %p129 = scmp.eq.s32.totalorder %s27, 0
      %p130 = por %p128, %p129
      %p131 = scmp.ne.s32.totalorder %s119, %s120
      %p132 = scmp.eq.s32.totalorder %s28, 1
      %p133 = por %p131, %p132
      %p135 = scmp.ne.s32.totalorder %s120, %s134
      %p136 = scmp.eq.s32.totalorder %s28, 0
      %p137 = por %p135, %p136
      %s139 = sadd.s32 %s138, 1
      %p142 = scmp.eq.s32.totalorder %s22, 1
      %p143 = scmp.ne.s32.totalorder %s138, %s140
      %p144 = scmp.eq.s32.totalorder %s22, 0
      %p145 = por %p143, %p144
      %p146 = scmp.ne.s32.totalorder %s138, %s140
      %p147 = scmp.eq.s32.totalorder %s27, 1
      %p148 = por %p146, %p147
      %p149 = scmp.ne.s32.totalorder %s140, %s141
      %p150 = scmp.eq.s32.totalorder %s27, 0
      %p151 = por %p149, %p150
      %p152 = scmp.ne.s32.totalorder %s140, %s141
      %p153 = scmp.eq.s32.totalorder %s28, 1
      %p154 = por %p152, %p153
      %p156 = scmp.ne.s32.totalorder %s141, %s155
      %p157 = scmp.eq.s32.totalorder %s28, 0
      %p158 = por %p156, %p157
      %s159 = ssub.s32 %s29, %s41
      %s160 = ssub.s32 %s30, %s37
      %s161 = sor.u32 %s159, %s160
      %p162 = scmp.eq.s32.totalorder %s161, 0
      %s164 = sadd.s32 %s163, 1
      %s165 = scalar_select %p162, %s163, %s164
      %p168 = pneg %p162
      %p169 = scmp.eq.s32.totalorder %s22, 1
      %p170 = por %p168, %p169
      %p171 = scmp.ne.s32.totalorder %s163, %s166
      %p172 = scmp.eq.s32.totalorder %s22, 0
      %p173 = por %p171, %p172
      %p174 = scmp.ne.s32.totalorder %s163, %s166
      %p175 = scmp.eq.s32.totalorder %s27, 1
      %p176 = por %p174, %p175
      %p177 = scmp.ne.s32.totalorder %s166, %s167
      %p178 = scmp.eq.s32.totalorder %s27, 0
      %p179 = por %p177, %p178
      %p180 = scmp.ne.s32.totalorder %s166, %s167
      %p181 = scmp.eq.s32.totalorder %s28, 1
      %p182 = por %p180, %p181
      %p184 = scmp.ne.s32.totalorder %s167, %s183
      %p185 = scmp.eq.s32.totalorder %s28, 0
      %p186 = por %p184, %p185
      %p187 = scmp.le.s32.totalorder 1, %s22
      %p188 = scmp.lt.s32.totalorder %s22, 3
      %p189 = pnand %p187, %p188
      %p190 = pneg %p189
      // Predicated region
      $region9: #{tpu_custom_call.1} parent=5 // pred_check
        _
      $region10: #{tpu_custom_call.1} parent=5 // pred_check_branch
        %192 = sbr.rel (%p189) target = $region12
      $region11: #{tpu_custom_call.1} parent=5 // pred_region
        %s193 = ssub.s32 %s22, 1
        // Predicated region
        $region13: #{tpu_custom_call.1} parent=11 // pred_check
          %p194 = pneg %p55
        $region14: #{tpu_custom_call.1} parent=11 // pred_check_branch
          %196 = sbr.rel (%p194) target = $region16
        $region15: #{tpu_custom_call.1} parent=11 // pred_region
          %s198 = ssub.s32 16, 16
          %199 = vsyncadd [#allocation6], %s198
          %202 = dma.hbm_to_smem %s0, 16, [#allocation3], [#allocation6]
        $region16: #{tpu_custom_call.1} parent=11 // pred_fallthru
          _
        // Predicated region
        $region17: #{tpu_custom_call.1} parent=11 // pred_check
          %p203 = pneg %p130
        $region18: #{tpu_custom_call.1} parent=11 // pred_check_branch
          %205 = sbr.rel (%p203) target = $region20
        $region19: #{tpu_custom_call.1} parent=11 // pred_region
          %s207 = ssub.s32 256, 256
          %208 = vsyncadd [#allocation9], %s207
          %s209 = sshll.u32 [#allocation10], 4
          %s210 = int_to_ptr.vmem [resolvable:$true] %s209
          %215 = dma.hbm_to_vmem [thread:$0]  %s3, 256, %s210, [#allocation9], 128, 128, 8
        $region20: #{tpu_custom_call.1} parent=11 // pred_fallthru
          _
        // Predicated region
        $region21: #{tpu_custom_call.1} parent=11 // pred_check
          %p216 = pneg %p151
        $region22: #{tpu_custom_call.1} parent=11 // pred_check_branch
          %218 = sbr.rel (%p216) target = $region24
        $region23: #{tpu_custom_call.1} parent=11 // pred_region
          %s220 = ssub.s32 2048, 2048
          %221 = vsyncadd [#allocation12], %s220
          %s222 = sshll.u32 [#allocation11], 4
          %s223 = int_to_ptr.vmem [resolvable:$true] %s222
          %228 = dma.hbm_to_vmem [thread:$0]  %s4, 2048, %s223, [#allocation12], 128, 128, 8
        $region24: #{tpu_custom_call.1} parent=11 // pred_fallthru
          _
      $region12: #{tpu_custom_call.1} parent=5 // pred_fallthru
        _
      %p229 = scmp.lt.s32.totalorder %s22, 2
      // Predicated region
      $region25: #{tpu_custom_call.1} parent=5 // pred_check
        %p230 = pneg %p229
      $region26: #{tpu_custom_call.1} parent=5 // pred_check_branch
        %232 = sbr.rel (%p230) target = $region28
      $region27: #{tpu_custom_call.1} parent=5 // pred_region
        // Predicated region
        $region29: #{tpu_custom_call.1} parent=27 // pred_check
          %p233 = pneg %p77
        $region30: #{tpu_custom_call.1} parent=27 // pred_check_branch
          %235 = sbr.rel (%p233) target = $region32
        $region31: #{tpu_custom_call.1} parent=27 // pred_region
          %s236 = sand.u32 %s67, 1
          %s237 = scalar_lea.sflag [#allocation4], %s236
          %s238 = sand.u32 %s67, 1
          %s239 = smul.addr %s238, 64
          %s240 = scalar_lea.vmem [#allocation7], %s239
          %s241 = smul.u32 4, %s30
          %s243 = ssub.s32 1024, 1024
          %244 = vsyncadd %s237, %s243
          %s245 = smul.addr %s241, 2
          %s246 = smul.addr %s29, 8
          %s247 = sadd.s32 %s245, %s246
          %s248 = smul.addr %s247, 128
          %s249 = scalar_lea.hbm %s1, %s248
          %s250 = sshll.u32 %s240, 4
          %s251 = int_to_ptr.vmem [resolvable:$true] %s250
          %256 = dma.hbm_to_vmem [thread:$0]  %s249, 1024, %s251, %s237, 128, 128, 8
        $region32: #{tpu_custom_call.1} parent=27 // pred_fallthru
          _
        // Predicated region
        $region33: #{tpu_custom_call.1} parent=27 // pred_check
          %p257 = pneg %p103
        $region34: #{tpu_custom_call.1} parent=27 // pred_check_branch
          %259 = sbr.rel (%p257) target = $region36
        $region35: #{tpu_custom_call.1} parent=27 // pred_region
          %s260 = sand.u32 %s22, 1
          %s261 = scalar_lea.sflag [#allocation9], %s260
          %s262 = sand.u32 %s93, 1
          %s263 = smul.addr %s262, 16
          %s264 = scalar_lea.vmem [#allocation8], %s263
          %s266 = ssub.s32 256, 256
          %267 = vsyncadd %s261, %s266
          %s268 = smul.addr %s29, 2
          %s269 = smul.addr %s268, 128
          %s270 = scalar_lea.hbm %s2, %s269
          %s271 = sshll.u32 %s264, 4
          %s272 = int_to_ptr.vmem [resolvable:$true] %s271
          %277 = dma.hbm_to_vmem [thread:$0]  %s270, 256, %s272, %s261, 128, 128, 8
        $region36: #{tpu_custom_call.1} parent=27 // pred_fallthru
          _
      $region28: #{tpu_custom_call.1} parent=5 // pred_fallthru
        _
      %p278 = scmp.le.s32.totalorder 1, %s22
      %p279 = scmp.lt.s32.totalorder %s22, 3
      %p280 = pnand %p278, %p279
      %p281 = pneg %p280
      // Predicated region
      $region37: #{tpu_custom_call.1} parent=5 // pred_check
        _
      $region38: #{tpu_custom_call.1} parent=5 // pred_check_branch
        %283 = sbr.rel (%p280) target = $region40
      $region39: #{tpu_custom_call.1} parent=5 // pred_region
        %s284 = ssub.s32 %s22, 1
        // Predicated region
        $region41: #{tpu_custom_call.1} parent=39 // pred_check
          %p285 = pneg %p55
        $region42: #{tpu_custom_call.1} parent=39 // pred_check_branch
          %287 = sbr.rel (%p285) target = $region44
        $region43: #{tpu_custom_call.1} parent=39 // pred_region
          %288 = dma.done [#allocation6], 16
        $region44: #{tpu_custom_call.1} parent=39 // pred_fallthru
          _
        %s289 = sand.u32 %s70, 1
        %s290 = scalar_lea.sflag [#allocation4], %s289
        %s291 = sand.u32 %s70, 1
        %s292 = smul.addr %s291, 64
        %s293 = scalar_lea.vmem [#allocation7], %s292
        // Predicated region
        $region45: #{tpu_custom_call.1} parent=39 // pred_check
          %p294 = pneg %p83
        $region46: #{tpu_custom_call.1} parent=39 // pred_check_branch
          %296 = sbr.rel (%p294) target = $region48
        $region47: #{tpu_custom_call.1} parent=39 // pred_region
          %297 = dma.done %s290, 1024
        $region48: #{tpu_custom_call.1} parent=39 // pred_fallthru
          _
        %s298 = sand.u32 %s27, 1
        %s299 = scalar_lea.sflag [#allocation9], %s298
        %s300 = sand.u32 %s96, 1
        %s301 = smul.addr %s300, 16
        %s302 = scalar_lea.vmem [#allocation8], %s301
        // Predicated region
        $region49: #{tpu_custom_call.1} parent=39 // pred_check
          %p303 = pneg %p109
        $region50: #{tpu_custom_call.1} parent=39 // pred_check_branch
          %305 = sbr.rel (%p303) target = $region52
        $region51: #{tpu_custom_call.1} parent=39 // pred_region
          %306 = dma.done %s299, 256
        $region52: #{tpu_custom_call.1} parent=39 // pred_fallthru
          _
        // Predicated region
        $region53: #{tpu_custom_call.1} parent=39 // pred_check
          %p307 = pneg %p130
        $region54: #{tpu_custom_call.1} parent=39 // pred_check_branch
          %309 = sbr.rel (%p307) target = $region56
        $region55: #{tpu_custom_call.1} parent=39 // pred_region
          %310 = dma.done [#allocation9], 256
        $region56: #{tpu_custom_call.1} parent=39 // pred_fallthru
          _
        // Predicated region
        $region57: #{tpu_custom_call.1} parent=39 // pred_check
          %p311 = pneg %p151
        $region58: #{tpu_custom_call.1} parent=39 // pred_check_branch
          %313 = sbr.rel (%p311) target = $region60
        $region59: #{tpu_custom_call.1} parent=39 // pred_region
          %314 = dma.done [#allocation12], 2048
        $region60: #{tpu_custom_call.1} parent=39 // pred_fallthru
          _
        %315 = sfence
        %p316 = pneg %p55
        %p317 = pneg %p52
        %s318 = sand.u32 %s70, 1
        %s319 = scalar_lea.sflag [#allocation4], %s318
        %s320 = sand.u32 %s70, 1
        %s321 = smul.addr %s320, 64
        %s322 = scalar_lea.vmem [#allocation7], %s321
        %p323 = pneg %p83
        %p324 = pneg %p80
        %s325 = sand.u32 %s27, 1
        %s326 = scalar_lea.sflag [#allocation9], %s325
        %s327 = sand.u32 %s96, 1
        %s328 = smul.addr %s327, 16
        %s329 = scalar_lea.vmem [#allocation8], %s328
        %p330 = pneg %p109
        %p331 = pneg %p106
        %p332 = pneg %p130
        %p333 = pneg %p127
        %p334 = pneg %p151
        %p335 = pneg %p148
        %p336 = pneg %p179
        %p337 = pneg %p176
        %s338 = sand.u32 %s166, 1
        %s339 = scalar_lea.sflag [#allocation5], %s338
        %s340 = sand.u32 %s166, 1
        %s341 = smul.addr %s340, 64
        %s342 = scalar_lea.vmem [#allocation13], %s341
        %s343 = smul.u32 4, %s32
        %s344 = smul.u32 4, %s32
        %s345 = smul.u32 %s31, 4
        %s346 = smul.u32 %s32, 4
        %s347 = sadd.s32 %s345, %s346
        %v348 = vld [vmem:[%s302] sm:$0xff]
        %v349 = vld [vmem:[%s302 + $0x8] sm:$0xff]
        %v350 = vsub.f32 1.0, %v348
        %v351 = vsub.f32 1.0, %v349
        %s352 = sld [smem:[#allocation3 + %s347]]
        %v353 = vld [vmem:[%s293] sm:$0xff]
        %v354 = vld [vmem:[%s293 + $0x8] sm:$0xff]
        %v355 = vmul.f32 %v348, %v353
        %v356 = vmul.f32 %v349, %v354
        %v357 = vstv %s352
        %v358 = vmul.f32 %v350, %v357
        %v359 = vmul.f32 %v351, %v357
        %v360 = vadd.f32 %v355, %v358
        %v361 = vadd.f32 %v356, %v359
        %362 = vst [vmem:[#allocation2] sm:$0xff] %v360
        %363 = vst [vmem:[#allocation2 + $0x8] sm:$0xff] %v361
        %s364 = sadd.s32 %s347, 1
        %s365 = sld [smem:[#allocation3 + %s364]]
        %s366 = scalar_lea.vmem %s293, 16 [#allocation7]
        %v367 = vld [vmem:[%s366] sm:$0xff]
        %v368 = vld [vmem:[%s366 + $0x8] sm:$0xff]
        %v369 = vmul.f32 %v348, %v367
        %v370 = vmul.f32 %v349, %v368
        %v371 = vstv %s365
        %v372 = vmul.f32 %v350, %v371
        %v373 = vmul.f32 %v351, %v371
        %v374 = vadd.f32 %v369, %v372
        %v375 = vadd.f32 %v370, %v373
        %376 = vst [vmem:[#allocation2 + $0x10] sm:$0xff] %v374
        %377 = vst [vmem:[#allocation2 + $0x18] sm:$0xff] %v375
        %s378 = sadd.s32 %s347, 2
        %s379 = sld [smem:[#allocation3 + %s378]]
        %s380 = scalar_lea.vmem %s293, 32 [#allocation7]
        %v381 = vld [vmem:[%s380] sm:$0xff]
        %v382 = vld [vmem:[%s380 + $0x8] sm:$0xff]
        %v383 = vmul.f32 %v348, %v381
        %v384 = vmul.f32 %v349, %v382
        %v385 = vstv %s379
        %v386 = vmul.f32 %v350, %v385
        %v387 = vmul.f32 %v351, %v385
        %v388 = vadd.f32 %v383, %v386
        %v389 = vadd.f32 %v384, %v387
        %390 = vst [vmem:[#allocation2 + $0x20] sm:$0xff] %v388
        %391 = vst [vmem:[#allocation2 + $0x28] sm:$0xff] %v389
        %s392 = sadd.s32 %s347, 3
        %s393 = sld [smem:[#allocation3 + %s392]]
        %s394 = scalar_lea.vmem %s293, 48 [#allocation7]
        %v395 = vld [vmem:[%s394] sm:$0xff]
        %v396 = vld [vmem:[%s394 + $0x8] sm:$0xff]
        %v397 = vmul.f32 %v348, %v395
        %v398 = vmul.f32 %v349, %v396
        %v399 = vstv %s393
        %v400 = vmul.f32 %v350, %v399
        %v401 = vmul.f32 %v351, %v399
        %v402 = vadd.f32 %v397, %v400
        %v403 = vadd.f32 %v398, %v401
        %404 = vst [vmem:[#allocation2 + $0x30] sm:$0xff] %v402
        %405 = vst [vmem:[#allocation2 + $0x38] sm:$0xff] %v403
        %v406 = vld [vmem:[#allocation2] sm:$0xff]
        %v407 = vld [vmem:[#allocation2 + $0x8] sm:$0xff]
        %v408 = vld [vmem:[#allocation2 + $0x10] sm:$0xff]
        %v409 = vld [vmem:[#allocation2 + $0x18] sm:$0xff]
        %v410 = vld [vmem:[#allocation2 + $0x20] sm:$0xff]
        %v411 = vld [vmem:[#allocation2 + $0x28] sm:$0xff]
        %v412 = vld [vmem:[#allocation2 + $0x30] sm:$0xff]
        %v413 = vld [vmem:[#allocation2 + $0x38] sm:$0xff]
        %v414 = vld [vmem:[#allocation11] sm:$0xff]
        %v415 = vld [vmem:[#allocation11 + $0x8] sm:$0xff]
        %v416 = vld [vmem:[#allocation11 + $0x10] sm:$0xff]
        %v417 = vld [vmem:[#allocation11 + $0x18] sm:$0xff]
        %v418 = vld [vmem:[#allocation11 + $0x20] sm:$0xff]
        %v419 = vld [vmem:[#allocation11 + $0x28] sm:$0xff]
        %v420 = vld [vmem:[#allocation11 + $0x30] sm:$0xff]
        %v421 = vld [vmem:[#allocation11 + $0x38] sm:$0xff]
        %v422 = vld [vmem:[#allocation11 + $0x40] sm:$0xff]
        %v423 = vld [vmem:[#allocation11 + $0x48] sm:$0xff]
        %v424 = vld [vmem:[#allocation11 + $0x50] sm:$0xff]
        %v425 = vld [vmem:[#allocation11 + $0x58] sm:$0xff]
        %v426 = vld [vmem:[#allocation11 + $0x60] sm:$0xff]
        %v427 = vld [vmem:[#allocation11 + $0x68] sm:$0xff]
        %v428 = vld [vmem:[#allocation11 + $0x70] sm:$0xff]
        %v429 = vld [vmem:[#allocation11 + $0x78] sm:$0xff]
        %430 = vmatprep.subr.mxu0 0.0
        %431 = vmatpush1.msra.mxu0 %v414
        %432 = vmatprep.subr.mxu0 0.0
        %433 = vmatpush1.msra.mxu0 %v415
        %434 = vmatprep.subr.mxu0 0.0
        %435 = vmatpush1.msra.mxu0 %v416
        %436 = vmatprep.subr.mxu0 0.0
        %437 = vmatpush1.msra.mxu0 %v417
        %438 = vmatprep.subr.mxu0 0.0
        %439 = vmatpush1.msra.mxu0 %v418
        %440 = vmatprep.subr.mxu0 0.0
        %441 = vmatpush1.msra.mxu0 %v419
        %442 = vmatprep.subr.mxu0 0.0
        %443 = vmatpush1.msra.mxu0 %v420
        %444 = vmatprep.subr.mxu0 0.0
        %445 = vmatpush1.msra.mxu0 %v421
        %446 = vmatprep.subr.mxu0 0.0
        %447 = vmatpush1.msra.mxu0 %v422
        %448 = vmatprep.subr.mxu0 0.0
        %449 = vmatpush1.msra.mxu0 %v423
        %450 = vmatprep.subr.mxu0 0.0
        %451 = vmatpush1.msra.mxu0 %v424
        %452 = vmatprep.subr.mxu0 0.0
        %453 = vmatpush1.msra.mxu0 %v425
        %454 = vmatprep.subr.mxu0 0.0
        %455 = vmatpush1.msra.mxu0 %v426
        %456 = vmatprep.subr.mxu0 0.0
        %457 = vmatpush1.msra.mxu0 %v427
        %458 = vmatprep.subr.mxu0 0.0
        %459 = vmatpush1.msra.mxu0 %v428
        %460 = vmatprep.subr.mxu0 0.0
        %461 = vmatpush1.msra.mxu0 %v429
        %462 = vmatprep.subr.mxu0 0.0
        %463 = vmatpush1.msra.mxu0 0.0
        %464 = vmatprep.subr.mxu0 0.0
        %465 = vmatpush1.msra.mxu0 0.0
        %466 = vmatprep.subr.mxu0 0.0
        %467 = vmatpush1.msra.mxu0 0.0
        %468 = vmatprep.subr.mxu0 0.0
        %469 = vmatpush1.msra.mxu0 0.0
        %470 = vmatprep.subr.mxu0 0.0
        %471 = vmatpush1.msra.mxu0 0.0
        %472 = vmatprep.subr.mxu0 0.0
        %473 = vmatpush1.msra.mxu0 0.0
        %474 = vmatprep.subr.mxu0 0.0
        %475 = vmatpush1.msra.mxu0 0.0
        %476 = vmatprep.subr.mxu0 0.0
        %477 = vmatpush1.msra.mxu0 0.0
        %478 = vmatprep.subr.mxu0 0.0
        %479 = vmatpush1.msra.mxu0 0.0
        %480 = vmatprep.subr.mxu0 0.0
        %481 = vmatpush1.msra.mxu0 0.0
        %482 = vmatprep.subr.mxu0 0.0
        %483 = vmatpush1.msra.mxu0 0.0
        %484 = vmatprep.subr.mxu0 0.0
        %485 = vmatpush1.msra.mxu0 0.0
        %486 = vmatprep.subr.mxu0 0.0
        %487 = vmatpush1.msra.mxu0 0.0
        %488 = vmatprep.subr.mxu0 0.0
        %489 = vmatpush1.msra.mxu0 0.0
        %490 = vmatprep.subr.mxu0 0.0
        %491 = vmatpush1.msra.mxu0 0.0
        %492 = vmatprep.subr.mxu0 0.0
        %493 = vmatpush1.msra.mxu0 0.0
        %494 = vmatprep.mubr.f32.mxu0 0.0
        %495 = vmatmul.mubr.f32.gmra.mrb[0].mxu0 %v406
        %v496 = vpop.f32.mrb[0].mxu0
        %v497 = vadd.f32 0.0, %v496
        %v498 = vpop.f32.mrb[0].mxu0
        %499 = vmatprep.mubr.f32.mxu0 0.0
        %500 = vmatmul.mubr.f32.gmra.mrb[0].mxu0 %v407
        %v501 = vpop.f32.mrb[0].mxu0
        %v502 = vadd.f32 0.0, %v501
        %v503 = vpop.f32.mrb[0].mxu0
        %504 = vmatprep.mubr.f32.mxu0 0.0
        %505 = vmatmul.mubr.f32.gmra.mrb[0].mxu0 %v408
        %v506 = vpop.f32.mrb[0].mxu0
        %v507 = vadd.f32 0.0, %v506
        %v508 = vpop.f32.mrb[0].mxu0
        %509 = vmatprep.mubr.f32.mxu0 0.0
        %510 = vmatmul.mubr.f32.gmra.mrb[0].mxu0 %v409
        %v511 = vpop.f32.mrb[0].mxu0
        %v512 = vadd.f32 0.0, %v511
        %v513 = vpop.f32.mrb[0].mxu0
        %514 = vmatprep.mubr.f32.mxu0 0.0
        %515 = vmatmul.mubr.f32.gmra.mrb[0].mxu0 %v410
        %v516 = vpop.f32.mrb[0].mxu0
        %v517 = vadd.f32 0.0, %v516
        %v518 = vpop.f32.mrb[0].mxu0
        %519 = vmatprep.mubr.f32.mxu0 0.0
        %520 = vmatmul.mubr.f32.gmra.mrb[0].mxu0 %v411
        %v521 = vpop.f32.mrb[0].mxu0
        %v522 = vadd.f32 0.0, %v521
        %v523 = vpop.f32.mrb[0].mxu0
        %524 = vmatprep.mubr.f32.mxu0 0.0
        %525 = vmatmul.mubr.f32.gmra.mrb[0].mxu0 %v412
        %v526 = vpop.f32.mrb[0].mxu0
        %v527 = vadd.f32 0.0, %v526
        %v528 = vpop.f32.mrb[0].mxu0
        %529 = vmatprep.mubr.f32.mxu0 0.0
        %530 = vmatmul.mubr.f32.gmra.mrb[0].mxu0 %v413
        %v531 = vpop.f32.mrb[0].mxu0
        %v532 = vadd.f32 0.0, %v531
        %v533 = vpop.f32.mrb[0].mxu0
        %534 = vdwg.mxu0
        %v535 = vld [vmem:[#allocation10] sm:$0xff]
        %v536 = vld [vmem:[#allocation10 + $0x8] sm:$0xff]
        %vm537 = vcmask 130048
        %v539 = vsel %vm537, %v535, 0
        %v542 = vsel %vm537, %v536, 0
        %544 = vmatprep.subr.mxu0 0.0
        %545 = vmatpush1.msra.mxu0 %v497
        %546 = vmatprep.subr.mxu0 0.0
        %547 = vmatpush1.msra.mxu0 %v502
        %548 = vmatprep.subr.mxu0 0.0
        %549 = vmatpush1.msra.mxu0 0.0
        %550 = vmatprep.subr.mxu0 0.0
        %551 = vmatpush1.msra.mxu0 0.0
        %552 = vmatprep.subr.mxu0 0.0
        %553 = vmatpush1.msra.mxu0 0.0
        %554 = vmatprep.subr.mxu0 0.0
        %555 = vmatpush1.msra.mxu0 0.0
        %556 = vmatprep.subr.mxu0 0.0
        %557 = vmatpush1.msra.mxu0 0.0
        %558 = vmatprep.subr.mxu0 0.0
        %559 = vmatpush1.msra.mxu0 0.0
        %560 = vmatprep.subr.mxu0 0.0
        %561 = vmatpush1.msra.mxu0 0.0
        %562 = vmatprep.subr.mxu0 0.0
        %563 = vmatpush1.msra.mxu0 0.0
        %564 = vmatprep.subr.mxu0 0.0
        %565 = vmatpush1.msra.mxu0 0.0
        %566 = vmatprep.subr.mxu0 0.0
        %567 = vmatpush1.msra.mxu0 0.0
        %568 = vmatprep.subr.mxu0 0.0
        %569 = vmatpush1.msra.mxu0 0.0
        %570 = vmatprep.subr.mxu0 0.0
        %571 = vmatpush1.msra.mxu0 0.0
        %572 = vmatprep.subr.mxu0 0.0
        %573 = vmatpush1.msra.mxu0 0.0
        %574 = vmatprep.subr.mxu0 0.0
        %575 = vmatpush1.msra.mxu0 0.0
        %576 = vmatprep.subr.mxu0 0.0
        %577 = vmatpush1.msra.mxu0 0.0
        %578 = vmatprep.subr.mxu0 0.0
        %579 = vmatpush1.msra.mxu0 0.0
        %580 = vmatprep.subr.mxu0 0.0
        %581 = vmatpush1.msra.mxu0 0.0
        %582 = vmatprep.subr.mxu0 0.0
        %583 = vmatpush1.msra.mxu0 0.0
        %584 = vmatprep.subr.mxu0 0.0
        %585 = vmatpush1.msra.mxu0 0.0
        %586 = vmatprep.subr.mxu0 0.0
        %587 = vmatpush1.msra.mxu0 0.0
        %588 = vmatprep.subr.mxu0 0.0
        %589 = vmatpush1.msra.mxu0 0.0
        %590 = vmatprep.subr.mxu0 0.0
        %591 = vmatpush1.msra.mxu0 0.0
        %592 = vmatprep.subr.mxu0 0.0
        %593 = vmatpush1.msra.mxu0 0.0
        %594 = vmatprep.subr.mxu0 0.0
        %595 = vmatpush1.msra.mxu0 0.0
        %596 = vmatprep.subr.mxu0 0.0
        %597 = vmatpush1.msra.mxu0 0.0
        %598 = vmatprep.subr.mxu0 0.0
        %599 = vmatpush1.msra.mxu0 0.0
        %600 = vmatprep.subr.mxu0 0.0
        %601 = vmatpush1.msra.mxu0 0.0
        %602 = vmatprep.subr.mxu0 0.0
        %603 = vmatpush1.msra.mxu0 0.0
        %604 = vmatprep.subr.mxu0 0.0
        %605 = vmatpush1.msra.mxu0 0.0
        %606 = vmatprep.subr.mxu0 0.0
        %607 = vmatpush1.msra.mxu0 0.0
        %608 = vmatprep.mubr.f32.mxu0 0.0
        %609 = vmatmul.mubr.f32.gmra.mrb[0].mxu0 %v539
        %v610 = vpop.f32.mrb[0].mxu0
        %v611 = vadd.f32 0.0, %v610
        %v612 = vpop.f32.mrb[0].mxu0
        %613 = vmatprep.mubr.f32.mxu0 0.0
        %614 = vmatmul.mubr.f32.gmra.mrb[0].mxu0 %v542
        %v615 = vpop.f32.mrb[0].mxu0
        %v616 = vadd.f32 0.0, %v615
        %v617 = vpop.f32.mrb[0].mxu0
        %618 = vdwg.mxu0
        %s619 = sld [smem:[#allocation3 + %s347]]
        %v620 = vld [vmem:[%s293] sm:$0xff]
        %v621 = vld [vmem:[%s293 + $0x8] sm:$0xff]
        %v622 = vmul.f32 %v348, %v620
        %v623 = vmul.f32 %v349, %v621
        %v624 = vstv %s619
        %v625 = vmul.f32 %v350, %v624
        %v626 = vmul.f32 %v351, %v624
        %v627 = vadd.f32 %v622, %v625
        %v628 = vadd.f32 %v623, %v626
        %v629 = vsub.f32 %v627, %v611
        %v630 = vsub.f32 %v628, %v616
        %v631 = vmul.f32 %v629, 4.0
        %v632 = vmul.f32 %v630, 4.0
        %v633 = vmax.f32 %v631, -1.0
        %v634 = vmax.f32 %v632, -1.0
        %v635 = vmin.f32 %v633, 1.0
        %v636 = vmin.f32 %v634, 1.0
        %637 = vst [vmem:[%s342] sm:$0xff] %v635
        %638 = vst [vmem:[%s342 + $0x8] sm:$0xff] %v636
        %639 = vmatprep.subr.mxu0 0.0
        %640 = vmatpush1.msra.mxu0 %v507
        %641 = vmatprep.subr.mxu0 0.0
        %642 = vmatpush1.msra.mxu0 %v512
        %643 = vmatprep.subr.mxu0 0.0
        %644 = vmatpush1.msra.mxu0 0.0
        %645 = vmatprep.subr.mxu0 0.0
        %646 = vmatpush1.msra.mxu0 0.0
        %647 = vmatprep.subr.mxu0 0.0
        %648 = vmatpush1.msra.mxu0 0.0
        %649 = vmatprep.subr.mxu0 0.0
        %650 = vmatpush1.msra.mxu0 0.0
        %651 = vmatprep.subr.mxu0 0.0
        %652 = vmatpush1.msra.mxu0 0.0
        %653 = vmatprep.subr.mxu0 0.0
        %654 = vmatpush1.msra.mxu0 0.0
        %655 = vmatprep.subr.mxu0 0.0
        %656 = vmatpush1.msra.mxu0 0.0
        %657 = vmatprep.subr.mxu0 0.0
        %658 = vmatpush1.msra.mxu0 0.0
        %659 = vmatprep.subr.mxu0 0.0
        %660 = vmatpush1.msra.mxu0 0.0
        %661 = vmatprep.subr.mxu0 0.0
        %662 = vmatpush1.msra.mxu0 0.0
        %663 = vmatprep.subr.mxu0 0.0
        %664 = vmatpush1.msra.mxu0 0.0
        %665 = vmatprep.subr.mxu0 0.0
        %666 = vmatpush1.msra.mxu0 0.0
        %667 = vmatprep.subr.mxu0 0.0
        %668 = vmatpush1.msra.mxu0 0.0
        %669 = vmatprep.subr.mxu0 0.0
        %670 = vmatpush1.msra.mxu0 0.0
        %671 = vmatprep.subr.mxu0 0.0
        %672 = vmatpush1.msra.mxu0 0.0
        %673 = vmatprep.subr.mxu0 0.0
        %674 = vmatpush1.msra.mxu0 0.0
        %675 = vmatprep.subr.mxu0 0.0
        %676 = vmatpush1.msra.mxu0 0.0
        %677 = vmatprep.subr.mxu0 0.0
        %678 = vmatpush1.msra.mxu0 0.0
        %679 = vmatprep.subr.mxu0 0.0
        %680 = vmatpush1.msra.mxu0 0.0
        %681 = vmatprep.subr.mxu0 0.0
        %682 = vmatpush1.msra.mxu0 0.0
        %683 = vmatprep.subr.mxu0 0.0
        %684 = vmatpush1.msra.mxu0 0.0
        %685 = vmatprep.subr.mxu0 0.0
        %686 = vmatpush1.msra.mxu0 0.0
        %687 = vmatprep.subr.mxu0 0.0
        %688 = vmatpush1.msra.mxu0 0.0
        %689 = vmatprep.subr.mxu0 0.0
        %690 = vmatpush1.msra.mxu0 0.0
        %691 = vmatprep.subr.mxu0 0.0
        %692 = vmatpush1.msra.mxu0 0.0
        %693 = vmatprep.subr.mxu0 0.0
        %694 = vmatpush1.msra.mxu0 0.0
        %695 = vmatprep.subr.mxu0 0.0
        %696 = vmatpush1.msra.mxu0 0.0
        %697 = vmatprep.subr.mxu0 0.0
        %698 = vmatpush1.msra.mxu0 0.0
        %699 = vmatprep.subr.mxu0 0.0
        %700 = vmatpush1.msra.mxu0 0.0
        %701 = vmatprep.subr.mxu0 0.0
        %702 = vmatpush1.msra.mxu0 0.0
        %703 = vmatprep.mubr.f32.mxu0 0.0
        %704 = vmatmul.mubr.f32.gmra.mrb[0].mxu0 %v539
        %v705 = vpop.f32.mrb[0].mxu0
        %v706 = vadd.f32 0.0, %v705
        %v707 = vpop.f32.mrb[0].mxu0
        %708 = vmatprep.mubr.f32.mxu0 0.0
        %709 = vmatmul.mubr.f32.gmra.mrb[0].mxu0 %v542
        %v710 = vpop.f32.mrb[0].mxu0
        %v711 = vadd.f32 0.0, %v710
        %v712 = vpop.f32.mrb[0].mxu0
        %713 = vdwg.mxu0
        %s714 = sld [smem:[#allocation3 + %s364]]
        %v715 = vld [vmem:[%s366] sm:$0xff]
        %v716 = vld [vmem:[%s366 + $0x8] sm:$0xff]
        %v717 = vmul.f32 %v348, %v715
        %v718 = vmul.f32 %v349, %v716
        %v719 = vstv %s714
        %v720 = vmul.f32 %v350, %v719
        %v721 = vmul.f32 %v351, %v719
        %v722 = vadd.f32 %v717, %v720
        %v723 = vadd.f32 %v718, %v721
        %v724 = vsub.f32 %v722, %v706
        %v725 = vsub.f32 %v723, %v711
        %v726 = vmul.f32 %v724, 4.0
        %v727 = vmul.f32 %v725, 4.0
        %v728 = vmax.f32 %v726, -1.0
        %v729 = vmax.f32 %v727, -1.0
        %v730 = vmin.f32 %v728, 1.0
        %v731 = vmin.f32 %v729, 1.0
        %s732 = scalar_lea.vmem %s342, 16 [#allocation13]
        %733 = vst [vmem:[%s732] sm:$0xff] %v730
        %734 = vst [vmem:[%s732 + $0x8] sm:$0xff] %v731
        %735 = vmatprep.subr.mxu0 0.0
        %736 = vmatpush1.msra.mxu0 %v517
        %737 = vmatprep.subr.mxu0 0.0
        %738 = vmatpush1.msra.mxu0 %v522
        %739 = vmatprep.subr.mxu0 0.0
        %740 = vmatpush1.msra.mxu0 0.0
        %741 = vmatprep.subr.mxu0 0.0
        %742 = vmatpush1.msra.mxu0 0.0
        %743 = vmatprep.subr.mxu0 0.0
        %744 = vmatpush1.msra.mxu0 0.0
        %745 = vmatprep.subr.mxu0 0.0
        %746 = vmatpush1.msra.mxu0 0.0
        %747 = vmatprep.subr.mxu0 0.0
        %748 = vmatpush1.msra.mxu0 0.0
        %749 = vmatprep.subr.mxu0 0.0
        %750 = vmatpush1.msra.mxu0 0.0
        %751 = vmatprep.subr.mxu0 0.0
        %752 = vmatpush1.msra.mxu0 0.0
        %753 = vmatprep.subr.mxu0 0.0
        %754 = vmatpush1.msra.mxu0 0.0
        %755 = vmatprep.subr.mxu0 0.0
        %756 = vmatpush1.msra.mxu0 0.0
        %757 = vmatprep.subr.mxu0 0.0
        %758 = vmatpush1.msra.mxu0 0.0
        %759 = vmatprep.subr.mxu0 0.0
        %760 = vmatpush1.msra.mxu0 0.0
        %761 = vmatprep.subr.mxu0 0.0
        %762 = vmatpush1.msra.mxu0 0.0
        %763 = vmatprep.subr.mxu0 0.0
        %764 = vmatpush1.msra.mxu0 0.0
        %765 = vmatprep.subr.mxu0 0.0
        %766 = vmatpush1.msra.mxu0 0.0
        %767 = vmatprep.subr.mxu0 0.0
        %768 = vmatpush1.msra.mxu0 0.0
        %769 = vmatprep.subr.mxu0 0.0
        %770 = vmatpush1.msra.mxu0 0.0
        %771 = vmatprep.subr.mxu0 0.0
        %772 = vmatpush1.msra.mxu0 0.0
        %773 = vmatprep.subr.mxu0 0.0
        %774 = vmatpush1.msra.mxu0 0.0
        %775 = vmatprep.subr.mxu0 0.0
        %776 = vmatpush1.msra.mxu0 0.0
        %777 = vmatprep.subr.mxu0 0.0
        %778 = vmatpush1.msra.mxu0 0.0
        %779 = vmatprep.subr.mxu0 0.0
        %780 = vmatpush1.msra.mxu0 0.0
        %781 = vmatprep.subr.mxu0 0.0
        %782 = vmatpush1.msra.mxu0 0.0
        %783 = vmatprep.subr.mxu0 0.0
        %784 = vmatpush1.msra.mxu0 0.0
        %785 = vmatprep.subr.mxu0 0.0
        %786 = vmatpush1.msra.mxu0 0.0
        %787 = vmatprep.subr.mxu0 0.0
        %788 = vmatpush1.msra.mxu0 0.0
        %789 = vmatprep.subr.mxu0 0.0
        %790 = vmatpush1.msra.mxu0 0.0
        %791 = vmatprep.subr.mxu0 0.0
        %792 = vmatpush1.msra.mxu0 0.0
        %793 = vmatprep.subr.mxu0 0.0
        %794 = vmatpush1.msra.mxu0 0.0
        %795 = vmatprep.subr.mxu0 0.0
        %796 = vmatpush1.msra.mxu0 0.0
        %797 = vmatprep.subr.mxu0 0.0
        %798 = vmatpush1.msra.mxu0 0.0
        %799 = vmatprep.mubr.f32.mxu0 0.0
        %800 = vmatmul.mubr.f32.gmra.mrb[0].mxu0 %v539
        %v801 = vpop.f32.mrb[0].mxu0
        %v802 = vadd.f32 0.0, %v801
        %v803 = vpop.f32.mrb[0].mxu0
        %804 = vmatprep.mubr.f32.mxu0 0.0
        %805 = vmatmul.mubr.f32.gmra.mrb[0].mxu0 %v542
        %v806 = vpop.f32.mrb[0].mxu0
        %v807 = vadd.f32 0.0, %v806
        %v808 = vpop.f32.mrb[0].mxu0
        %809 = vdwg.mxu0
        %s810 = sld [smem:[#allocation3 + %s378]]
        %v811 = vld [vmem:[%s380] sm:$0xff]
        %v812 = vld [vmem:[%s380 + $0x8] sm:$0xff]
        %v813 = vmul.f32 %v348, %v811
        %v814 = vmul.f32 %v349, %v812
        %v815 = vstv %s810
        %v816 = vmul.f32 %v350, %v815
        %v817 = vmul.f32 %v351, %v815
        %v818 = vadd.f32 %v813, %v816
        %v819 = vadd.f32 %v814, %v817
        %v820 = vsub.f32 %v818, %v802
        %v821 = vsub.f32 %v819, %v807
        %v822 = vmul.f32 %v820, 4.0
        %v823 = vmul.f32 %v821, 4.0
        %v824 = vmax.f32 %v822, -1.0
        %v825 = vmax.f32 %v823, -1.0
        %v826 = vmin.f32 %v824, 1.0
        %v827 = vmin.f32 %v825, 1.0
        %s828 = scalar_lea.vmem %s342, 32 [#allocation13]
        %829 = vst [vmem:[%s828] sm:$0xff] %v826
        %830 = vst [vmem:[%s828 + $0x8] sm:$0xff] %v827
        %831 = vmatprep.subr.mxu0 0.0
        %832 = vmatpush1.msra.mxu0 %v527
        %833 = vmatprep.subr.mxu0 0.0
        %834 = vmatpush1.msra.mxu0 %v532
        %835 = vmatprep.subr.mxu0 0.0
        %836 = vmatpush1.msra.mxu0 0.0
        %837 = vmatprep.subr.mxu0 0.0
        %838 = vmatpush1.msra.mxu0 0.0
        %839 = vmatprep.subr.mxu0 0.0
        %840 = vmatpush1.msra.mxu0 0.0
        %841 = vmatprep.subr.mxu0 0.0
        %842 = vmatpush1.msra.mxu0 0.0
        %843 = vmatprep.subr.mxu0 0.0
        %844 = vmatpush1.msra.mxu0 0.0
        %845 = vmatprep.subr.mxu0 0.0
        %846 = vmatpush1.msra.mxu0 0.0
        %847 = vmatprep.subr.mxu0 0.0
        %848 = vmatpush1.msra.mxu0 0.0
        %849 = vmatprep.subr.mxu0 0.0
        %850 = vmatpush1.msra.mxu0 0.0
        %851 = vmatprep.subr.mxu0 0.0
        %852 = vmatpush1.msra.mxu0 0.0
        %853 = vmatprep.subr.mxu0 0.0
        %854 = vmatpush1.msra.mxu0 0.0
        %855 = vmatprep.subr.mxu0 0.0
        %856 = vmatpush1.msra.mxu0 0.0
        %857 = vmatprep.subr.mxu0 0.0
        %858 = vmatpush1.msra.mxu0 0.0
        %859 = vmatprep.subr.mxu0 0.0
        %860 = vmatpush1.msra.mxu0 0.0
        %861 = vmatprep.subr.mxu0 0.0
        %862 = vmatpush1.msra.mxu0 0.0
        %863 = vmatprep.subr.mxu0 0.0
        %864 = vmatpush1.msra.mxu0 0.0
        %865 = vmatprep.subr.mxu0 0.0
        %866 = vmatpush1.msra.mxu0 0.0
        %867 = vmatprep.subr.mxu0 0.0
        %868 = vmatpush1.msra.mxu0 0.0
        %869 = vmatprep.subr.mxu0 0.0
        %870 = vmatpush1.msra.mxu0 0.0
        %871 = vmatprep.subr.mxu0 0.0
        %872 = vmatpush1.msra.mxu0 0.0
        %873 = vmatprep.subr.mxu0 0.0
        %874 = vmatpush1.msra.mxu0 0.0
        %875 = vmatprep.subr.mxu0 0.0
        %876 = vmatpush1.msra.mxu0 0.0
        %877 = vmatprep.subr.mxu0 0.0
        %878 = vmatpush1.msra.mxu0 0.0
        %879 = vmatprep.subr.mxu0 0.0
        %880 = vmatpush1.msra.mxu0 0.0
        %881 = vmatprep.subr.mxu0 0.0
        %882 = vmatpush1.msra.mxu0 0.0
        %883 = vmatprep.subr.mxu0 0.0
        %884 = vmatpush1.msra.mxu0 0.0
        %885 = vmatprep.subr.mxu0 0.0
        %886 = vmatpush1.msra.mxu0 0.0
        %887 = vmatprep.subr.mxu0 0.0
        %888 = vmatpush1.msra.mxu0 0.0
        %889 = vmatprep.subr.mxu0 0.0
        %890 = vmatpush1.msra.mxu0 0.0
        %891 = vmatprep.subr.mxu0 0.0
        %892 = vmatpush1.msra.mxu0 0.0
        %893 = vmatprep.subr.mxu0 0.0
        %894 = vmatpush1.msra.mxu0 0.0
        %895 = vmatprep.mubr.f32.mxu0 0.0
        %896 = vmatmul.mubr.f32.gmra.mrb[0].mxu0 %v539
        %v897 = vpop.f32.mrb[0].mxu0
        %v898 = vadd.f32 0.0, %v897
        %v899 = vpop.f32.mrb[0].mxu0
        %900 = vmatprep.mubr.f32.mxu0 0.0
        %901 = vmatmul.mubr.f32.gmra.mrb[0].mxu0 %v542
        %v902 = vpop.f32.mrb[0].mxu0
        %v903 = vadd.f32 0.0, %v902
        %v904 = vpop.f32.mrb[0].mxu0
        %905 = vdwg.mxu0
        %s906 = sld [smem:[#allocation3 + %s392]]
        %v907 = vld [vmem:[%s394] sm:$0xff]
        %v908 = vld [vmem:[%s394 + $0x8] sm:$0xff]
        %v909 = vmul.f32 %v348, %v907
        %v910 = vmul.f32 %v349, %v908
        %v911 = vstv %s906
        %v912 = vmul.f32 %v350, %v911
        %v913 = vmul.f32 %v351, %v911
        %v914 = vadd.f32 %v909, %v912
        %v915 = vadd.f32 %v910, %v913
        %v916 = vsub.f32 %v914, %v898
        %v917 = vsub.f32 %v915, %v903
        %v918 = vmul.f32 %v916, 4.0
        %v919 = vmul.f32 %v917, 4.0
        %v920 = vmax.f32 %v918, -1.0
        %v921 = vmax.f32 %v919, -1.0
        %v922 = vmin.f32 %v920, 1.0
        %v923 = vmin.f32 %v921, 1.0
        %s924 = scalar_lea.vmem %s342, 48 [#allocation13]
        %925 = vst [vmem:[%s924] sm:$0xff] %v922
        %926 = vst [vmem:[%s924 + $0x8] sm:$0xff] %v923
        %s927 = sand.u32 %s166, 1
        %s928 = scalar_lea.sflag [#allocation5], %s927
        %s929 = sand.u32 %s166, 1
        %s930 = smul.addr %s929, 64
        %s931 = scalar_lea.vmem [#allocation13], %s930
        // Predicated region
        $region61: #{tpu_custom_call.1} parent=39 // pred_check
          %p932 = pneg %p176
        $region62: #{tpu_custom_call.1} parent=39 // pred_check_branch
          %934 = sbr.rel (%p932) target = $region64
        $region63: #{tpu_custom_call.1} parent=39 // pred_region
          %s935 = smul.u32 4, %s32
          %s937 = ssub.s32 1024, 1024
          %938 = vsyncadd %s928, %s937
          %s939 = smul.addr %s935, 2
          %s940 = smul.addr %s31, 8
          %s941 = sadd.s32 %s939, %s940
          %s942 = smul.addr %s941, 128
          %s943 = scalar_lea.hbm %s5, %s942
          %s944 = sshll.u32 %s931, 4
          %s945 = int_to_ptr.vmem [resolvable:$true] %s944
          %950 = dma.vmem_to_hbm [thread:$0]  %s945, 1024, %s943, %s928, 128, 128, 8
        $region64: #{tpu_custom_call.1} parent=39 // pred_fallthru
          _
      $region40: #{tpu_custom_call.1} parent=5 // pred_fallthru
        _
      %p951 = scmp.le.s32.totalorder 2, %s22
      // Predicated region
      $region65: #{tpu_custom_call.1} parent=5 // pred_check
        %p952 = pneg %p951
      $region66: #{tpu_custom_call.1} parent=5 // pred_check_branch
        %954 = sbr.rel (%p952) target = $region68
      $region67: #{tpu_custom_call.1} parent=5 // pred_region
        %s955 = ssub.s32 %s22, 2
        // Predicated region
        $region69: #{tpu_custom_call.1} parent=67 // pred_check
          %p956 = pneg %p182
        $region70: #{tpu_custom_call.1} parent=67 // pred_check_branch
          %958 = sbr.rel (%p956) target = $region72
        $region71: #{tpu_custom_call.1} parent=67 // pred_region
          %s959 = sand.u32 %s167, 1
          %s960 = scalar_lea.sflag [#allocation5], %s959
          %s961 = sand.u32 %s167, 1
          %s962 = smul.addr %s961, 64
          %s963 = scalar_lea.vmem [#allocation13], %s962
          %964 = dma.done %s960, 1024
        $region72: #{tpu_custom_call.1} parent=67 // pred_fallthru
          _
      $region68: #{tpu_custom_call.1} parent=5 // pred_fallthru
        _
    $region6: #{tpu_custom_call.1} parent=1 // loop_footer
      %s26 = sadd.s32 1, %s22
    $region7: #{tpu_custom_call.1} parent=1 // loop_footer_branch
      %21 = sbr.rel target = $region3
    $region8: #{tpu_custom_call.1} parent=1 // loop_exit
      _
    %965 = vsyncpa [#allocation4], 1
    %s966 = scalar_lea.sflag [#allocation4], 1
    %967 = vsyncpa %s966, 1
    %968 = vsyncpa [#allocation9], 1
    %s969 = scalar_lea.sflag [#allocation9], 1
    %970 = vsyncpa %s969, 1
    %971 = vsyncpa [#allocation12], 1
    %972 = vsyncpa [#allocation5], 1
    %s973 = scalar_lea.sflag [#allocation5], 1
    %974 = vsyncpa %s973, 1
    %975 = vsyncpa [#allocation6], 1
    %s976 = scalar_lea.sflag [#allocation6], 1
    %977 = vsyncpa %s976, 1

</llo_original>
